<compile_context>
chip_gen: v6e
topology: v6e:2x2x1
jax: 0.10.0
libtpu: 0.0.40
codegen_flags: <defaults>
</compile_context>

<pallas_src>
import functools

import jax
import jax.numpy as jnp
from jax import lax
from jax.experimental import pallas as pl
from jax.experimental.pallas import tpu as pltpu


def _lm_head_kernel(eps):
    eps = float(eps)  # static Python float -> baked into the kernel, not captured

    def kernel(x_ref, wd_ref, bd_ref, g_ref, b_ref, wdec_ref, bdec_ref,
               out_ref, h_ref):
        j = pl.program_id(1)

        # ---- dense -> gelu -> LayerNorm, once per row block (j == 0) ----
        @pl.when(j == 0)
        def _():
            x = x_ref[...]                                   # (tm, H), compute dtype
            # dense: x @ W_dense  (pre-transposed to [in, out]); f32 accumulation
            h = jnp.dot(x, wd_ref[...], preferred_element_type=jnp.float32)
            h = h + bd_ref[...]                              # f32 bias row

            # gelu (exact, erf-based — matches transformers' `gelu`)
            h = 0.5 * h * (1.0 + lax.erf(h * 0.7071067811865476))

            # LayerNorm over hidden axis (f32 statistics, rsqrt -> EUP)
            mean = jnp.mean(h, axis=-1, keepdims=True)
            c = h - mean
            var = jnp.mean(c * c, axis=-1, keepdims=True)
            h = c * lax.rsqrt(var + eps)
            h = h * g_ref[...] + b_ref[...]                  # f32 gamma/beta rows

            # store in compute dtype so the decoder matmul is MXU-native
            h_ref[...] = h.astype(h_ref.dtype)

        # ---- decoder tile: h @ W_dec_tile + bias_tile  (W_dec pre-transposed [H, V]) ----
        logits = jnp.dot(h_ref[...], wdec_ref[...],
                         preferred_element_type=jnp.float32)
        logits = logits + bdec_ref[...]
        out_ref[...] = logits.astype(out_ref.dtype)

    return kernel


def _round_up(a, m):
    return (a + m - 1) // m * m


@functools.partial(jax.jit,
                   static_argnames=("eps", "tm", "tn", "compute_dtype", "out_dtype"))
def roberta_lm_head(features, w_dense, b_dense, ln_gamma, ln_beta, w_dec, b_dec,
                    *, eps=1e-5, tm=768, tn=1024,
                    compute_dtype=jnp.bfloat16, out_dtype=None):
    """features: [B, S, H] -> logits: [B, S, V].

    Weights are in PyTorch layout: w_dense [H, H] ([out, in]), w_dec [V, H].
    compute_dtype: dtype used for x / weights / h scratch on the MXU (f32 accumulation,
                   f32 LayerNorm statistics regardless).
    out_dtype: dtype of the returned logits (defaults to features.dtype).
    """
    B, S, H = features.shape
    V = w_dec.shape[0]
    N = B * S

    compute_dtype = jnp.dtype(compute_dtype)
    out_dtype = jnp.dtype(out_dtype) if out_dtype is not None else features.dtype

    # ---- tile-size selection -------------------------------------------------
    # bf16 packs two rows per sublane -> align row blocks to 16 (8 for f32).
    row_align = 16 if compute_dtype == jnp.dtype(jnp.bfloat16) else 8
    tn = min(_round_up(tn, 128), _round_up(V, 128))   # lane-dense vocab tiles
    tm = _round_up(tm, row_align)
    if N >= 2 * row_align:
        # keep >= 2 row blocks so v7x's two TensorCores both get work
        tm = min(tm, _round_up(-(-N // 2), row_align))
    tm = min(tm, _round_up(N, row_align))

    Np = _round_up(N, tm)
    Vp = _round_up(V, tn)

    # ---- one-time wrapper-side layout work (amortized over the whole kernel) ----
    x2d = features.reshape(N, H).astype(compute_dtype)
    if Np != N:
        x2d = jnp.pad(x2d, ((0, Np - N), (0, 0)))

    w_dense_t = w_dense.T.astype(compute_dtype)        # [H_in, H_out]
    w_dec_t = w_dec.T.astype(compute_dtype)            # [H, V]
    b_dec_p = b_dec
    if Vp != V:
        w_dec_t = jnp.pad(w_dec_t, ((0, 0), (0, Vp - V)))
        b_dec_p = jnp.pad(b_dec, ((0, Vp - V),))

    bd_2d = b_dense.astype(jnp.float32).reshape(1, H)
    g_2d = ln_gamma.astype(jnp.float32).reshape(1, H)
    bln_2d = ln_beta.astype(jnp.float32).reshape(1, H)
    bdec_2d = b_dec_p.astype(jnp.float32).reshape(1, Vp)

    grid = (Np // tm, Vp // tn)

    # ---- VMEM budget (double-buffered pipeline blocks + h scratch) ----
    cbytes = compute_dtype.itemsize
    obytes = out_dtype.itemsize
    vmem_bytes = (
        2 * tm * H * cbytes           # x row block (double-buffered)
        + 2 * H * H * cbytes          # dense weight
        + 2 * 3 * H * 4               # dense bias + LN gamma/beta (f32)
        + 2 * H * tn * cbytes         # decoder weight vocab tile (double-buffered)
        + 2 * tn * 4                  # decoder bias tile (f32)
        + 2 * tm * tn * obytes        # output tile (double-buffered)
        + tm * H * cbytes             # h scratch
    )
    vmem_limit = max(32 << 20, min(int(vmem_bytes * 1.5) + (8 << 20), 96 << 20))

    # Advisory cost for XLA's scheduler around the custom call.
    cost = pl.CostEstimate(
        flops=2 * N * H * H + 2 * N * H * Vp,
        transcendentals=N * H,
        bytes_accessed=(Np * H * cbytes
                        + H * H * cbytes
                        + (Np // tm) * H * Vp * cbytes   # w_dec re-streamed per row block
                        + Np * Vp * obytes))

    out2d = pl.pallas_call(
        _lm_head_kernel(eps),
        out_shape=jax.ShapeDtypeStruct((Np, Vp), out_dtype),
        grid_spec=pltpu.PrefetchScalarGridSpec(
            num_scalar_prefetch=0,
            grid=grid,
            in_specs=[
                pl.BlockSpec((tm, H), lambda i, j: (i, 0)),   # x row block
                pl.BlockSpec((H, H), lambda i, j: (0, 0)),    # dense W [in, out]
                pl.BlockSpec((1, H), lambda i, j: (0, 0)),    # dense bias (f32)
                pl.BlockSpec((1, H), lambda i, j: (0, 0)),    # LN gamma (f32)
                pl.BlockSpec((1, H), lambda i, j: (0, 0)),    # LN beta (f32)
                pl.BlockSpec((H, tn), lambda i, j: (0, j)),   # decoder W vocab tile [H, V]
                pl.BlockSpec((1, tn), lambda i, j: (0, j)),   # decoder bias tile (f32)
            ],
            out_specs=pl.BlockSpec((tm, tn), lambda i, j: (i, j)),
            scratch_shapes=[pltpu.VMEM((tm, H), compute_dtype)],  # h, computed at j == 0
        ),
        compiler_params=pltpu.CompilerParams(
            # j (vocab) MUST stay sequential: it reuses the per-row-block h scratch.
            dimension_semantics=("parallel", "arbitrary"),
            vmem_limit_bytes=vmem_limit),
        cost_estimate=cost,
    )(x2d, w_dense_t, bd_2d, g_2d, bln_2d, w_dec_t, bdec_2d)

    return out2d[:N, :V].reshape(B, S, V)


def _reference(features, w_dense, b_dense, ln_gamma, ln_beta, w_dec, b_dec, eps=1e-5):
    x = features @ w_dense.T + b_dense
    x = 0.5 * x * (1.0 + lax.erf(x / jnp.sqrt(2.0)))
    mean = jnp.mean(x, axis=-1, keepdims=True)
    var = jnp.mean((x - mean) ** 2, axis=-1, keepdims=True)
    x = (x - mean) / jnp.sqrt(var + eps) * ln_gamma + ln_beta
    return x @ w_dec.T + b_dec


if __name__ == "__main__":
    B, S, H, V = 2, 8, 32, 64
    eps = 1e-5

    key = jax.random.PRNGKey(0)
    k_feat, k_wd, k_bd, k_g, k_b, k_wdec = jax.random.split(key, 6)

    features = jax.random.normal(k_feat, (B, S, H), dtype=jnp.float32)
    w_dense = jax.random.normal(k_wd, (H, H), dtype=jnp.float32) * 0.02
    b_dense = jax.random.normal(k_bd, (H,), dtype=jnp.float32) * 0.02
    ln_gamma = jnp.ones((H,), dtype=jnp.float32)
    ln_beta = jnp.zeros((H,), dtype=jnp.float32)
    w_dec = jax.random.normal(k_wdec, (V, H), dtype=jnp.float32) * 0.02
    b_dec = jnp.zeros((V,), dtype=jnp.float32)   # self.bias initialized to zeros

    ref = _reference(features, w_dense, b_dense, ln_gamma, ln_beta, w_dec, b_dec, eps)

    # f32 compute path: bit-faithful to the reference (tight tolerance).
    out_f32 = roberta_lm_head(features, w_dense, b_dense, ln_gamma, ln_beta,
                              w_dec, b_dec, eps=eps, compute_dtype=jnp.float32)
    out_f32 = jax.block_until_ready(out_f32)
    assert out_f32.shape == (B, S, V)
    assert jnp.allclose(out_f32, ref, atol=2e-3, rtol=2e-3), \
        float(jnp.max(jnp.abs(out_f32 - ref)))

    # Default bf16 compute path (MXU-native, halves the w_dec HBM stream);
    # f32 accumulation + f32 LN stats, so only ~bf16-level rounding vs the f32 ref.
    out_bf16 = roberta_lm_head(features, w_dense, b_dense, ln_gamma, ln_beta,
                               w_dec, b_dec, eps=eps)
    out_bf16 = jax.block_until_ready(out_bf16)
    assert out_bf16.shape == (B, S, V)
    assert jnp.allclose(out_bf16, ref, atol=2e-2, rtol=2e-2), \
        float(jnp.max(jnp.abs(out_bf16 - ref)))

    print("KERNEL_OK")
</pallas_src>

<mosaic_0001>
module attributes {stable_mosaic.version = 11 : i64} {
  func.func @kernel(%arg0: i32, %arg1: i32, %arg2: memref<8x32xf32, #tpu.memory_space<vmem>>, %arg3: memref<32x32xf32, #tpu.memory_space<vmem>>, %arg4: memref<1x32xf32, #tpu.memory_space<vmem>>, %arg5: memref<1x32xf32, #tpu.memory_space<vmem>>, %arg6: memref<1x32xf32, #tpu.memory_space<vmem>>, %arg7: memref<32x128xf32, #tpu.memory_space<vmem>>, %arg8: memref<1x128xf32, #tpu.memory_space<vmem>>, %arg9: memref<8x128xf32, #tpu.memory_space<vmem>>, %arg10: memref<8x32xf32, #tpu.memory_space<vmem>>) attributes {dimension_semantics = [#tpu.dimension_semantics<parallel>, #tpu.dimension_semantics<arbitrary>], iteration_bounds = array<i64: 2, 1>, scalar_prefetch = 0 : i64, scratch_operands = 1 : i64, tpu.core_type = #tpu.core_type<tc>, window_params = [{transform_indices = @transform_0, window_bounds = array<i64: 8, 32>}, {pipeline_mode = #tpu.pipeline_mode<synchronous>, transform_indices = @transform_1, window_bounds = array<i64: 32, 32>}, {pipeline_mode = #tpu.pipeline_mode<synchronous>, transform_indices = @transform_2, window_bounds = array<i64: 1, 32>}, {pipeline_mode = #tpu.pipeline_mode<synchronous>, transform_indices = @transform_3, window_bounds = array<i64: 1, 32>}, {pipeline_mode = #tpu.pipeline_mode<synchronous>, transform_indices = @transform_4, window_bounds = array<i64: 1, 32>}, {transform_indices = @transform_5, window_bounds = array<i64: 32, 128>}, {transform_indices = @transform_6, window_bounds = array<i64: 1, 128>}, {transform_indices = @transform_7, window_bounds = array<i64: 8, 128>}]} {
    %c0_i32 = arith.constant 0 : i32
    %0 = arith.cmpi eq, %arg1, %c0_i32 : i32
    %1 = arith.extui %0 : i1 to i32
    %c0_i32_0 = arith.constant 0 : i32
    %2 = arith.cmpi ne, %1, %c0_i32_0 : i32
    scf.if %2 {
      %c0_8 = arith.constant 0 : index
      %c0_9 = arith.constant 0 : index
      %10 = vector.load %arg2[%c0_8, %c0_9] : memref<8x32xf32, #tpu.memory_space<vmem>>, vector<8x32xf32>
      %c0_10 = arith.constant 0 : index
      %c0_11 = arith.constant 0 : index
      %11 = vector.load %arg3[%c0_10, %c0_11] : memref<32x32xf32, #tpu.memory_space<vmem>>, vector<32x32xf32>
      %cst_12 = arith.constant dense<0.000000e+00> : vector<8x32xf32>
      %12 = tpu.matmul %10, %11, %cst_12 {dimension_numbers = #tpu.dot_dimension_numbers<[1], [0], [0], [1], [0, 0, 1, 1], [], []>} : vector<8x32xf32>, vector<32x32xf32>, vector<8x32xf32> -> vector<8x32xf32>
      %c0_13 = arith.constant 0 : index
      %c0_14 = arith.constant 0 : index
      %13 = vector.load %arg4[%c0_13, %c0_14] : memref<1x32xf32, #tpu.memory_space<vmem>>, vector<1x32xf32>
      %14 = vector.broadcast %13 : vector<1x32xf32> to vector<8x32xf32>
      %15 = arith.addf %12, %14 : vector<8x32xf32>
      %cst_15 = arith.constant 5.000000e-01 : f32
      %16 = vector.broadcast %cst_15 : f32 to vector<8x32xf32>
      %17 = arith.mulf %16, %15 : vector<8x32xf32>
      %cst_16 = arith.constant 0.707106769 : f32
      %18 = vector.broadcast %cst_16 : f32 to vector<8x32xf32>
      %19 = arith.mulf %15, %18 : vector<8x32xf32>
      %20 = math.erf %19 : vector<8x32xf32>
      %cst_17 = arith.constant 1.000000e+00 : f32
      %21 = vector.broadcast %cst_17 : f32 to vector<8x32xf32>
      %22 = arith.addf %21, %20 : vector<8x32xf32>
      %23 = arith.mulf %17, %22 : vector<8x32xf32>
      %cst_18 = arith.constant dense<0.000000e+00> : vector<8xf32>
      %24 = vector.multi_reduction <add>, %23, %cst_18 [1] : vector<8x32xf32> to vector<8xf32>
      %25 = vector.shape_cast %24 : vector<8xf32> to vector<8x1xf32>
      %cst_19 = arith.constant 3.200000e+01 : f32
      %26 = vector.broadcast %cst_19 : f32 to vector<8x1xf32>
      %27 = arith.divf %25, %26 : vector<8x1xf32>
      %28 = vector.broadcast %27 : vector<8x1xf32> to vector<8x32xf32>
      %29 = arith.subf %23, %28 : vector<8x32xf32>
      %30 = arith.mulf %29, %29 : vector<8x32xf32>
      %cst_20 = arith.constant dense<0.000000e+00> : vector<8xf32>
      %31 = vector.multi_reduction <add>, %30, %cst_20 [1] : vector<8x32xf32> to vector<8xf32>
      %32 = vector.shape_cast %31 : vector<8xf32> to vector<8x1xf32>
      %cst_21 = arith.constant 3.200000e+01 : f32
      %33 = vector.broadcast %cst_21 : f32 to vector<8x1xf32>
      %34 = arith.divf %32, %33 : vector<8x1xf32>
      %cst_22 = arith.constant 9.99999974E-6 : f32
      %35 = vector.broadcast %cst_22 : f32 to vector<8x1xf32>
      %36 = arith.addf %34, %35 : vector<8x1xf32>
      %37 = math.rsqrt %36 : vector<8x1xf32>
      %38 = vector.broadcast %37 : vector<8x1xf32> to vector<8x32xf32>
      %39 = arith.mulf %29, %38 : vector<8x32xf32>
      %c0_23 = arith.constant 0 : index
      %c0_24 = arith.constant 0 : index
      %40 = vector.load %arg5[%c0_23, %c0_24] : memref<1x32xf32, #tpu.memory_space<vmem>>, vector<1x32xf32>
      %41 = vector.broadcast %40 : vector<1x32xf32> to vector<8x32xf32>
      %42 = arith.mulf %39, %41 : vector<8x32xf32>
      %c0_25 = arith.constant 0 : index
      %c0_26 = arith.constant 0 : index
      %43 = vector.load %arg6[%c0_25, %c0_26] : memref<1x32xf32, #tpu.memory_space<vmem>>, vector<1x32xf32>
      %44 = vector.broadcast %43 : vector<1x32xf32> to vector<8x32xf32>
      %45 = arith.addf %42, %44 : vector<8x32xf32>
      %c0_27 = arith.constant 0 : index
      %c0_28 = arith.constant 0 : index
      %46 = vector.load %arg10[%c0_27, %c0_28] : memref<8x32xf32, #tpu.memory_space<vmem>>, vector<8x32xf32>
      tpu.vector_store %arg10[%c0_27, %c0_28], %45 {strides = array<i32>} : memref<8x32xf32, #tpu.memory_space<vmem>>, vector<8x32xf32>,
    } else {
    }
    %c0 = arith.constant 0 : index
    %c0_1 = arith.constant 0 : index
    %3 = vector.load %arg10[%c0, %c0_1] : memref<8x32xf32, #tpu.memory_space<vmem>>, vector<8x32xf32>
    %c0_2 = arith.constant 0 : index
    %c0_3 = arith.constant 0 : index
    %4 = vector.load %arg7[%c0_2, %c0_3] : memref<32x128xf32, #tpu.memory_space<vmem>>, vector<32x128xf32>
    %cst = arith.constant dense<0.000000e+00> : vector<8x128xf32>
    %5 = tpu.matmul %3, %4, %cst {dimension_numbers = #tpu.dot_dimension_numbers<[1], [0], [0], [1], [0, 0, 1, 1], [], []>} : vector<8x32xf32>, vector<32x128xf32>, vector<8x128xf32> -> vector<8x128xf32>
    %c0_4 = arith.constant 0 : index
    %c0_5 = arith.constant 0 : index
    %6 = vector.load %arg8[%c0_4, %c0_5] : memref<1x128xf32, #tpu.memory_space<vmem>>, vector<1x128xf32>
    %7 = vector.broadcast %6 : vector<1x128xf32> to vector<8x128xf32>
    %8 = arith.addf %5, %7 : vector<8x128xf32>
    %c0_6 = arith.constant 0 : index
    %c0_7 = arith.constant 0 : index
    %9 = vector.load %arg9[%c0_6, %c0_7] : memref<8x128xf32, #tpu.memory_space<vmem>>, vector<8x128xf32>
    tpu.vector_store %arg9[%c0_6, %c0_7], %8 {strides = array<i32>} : memref<8x128xf32, #tpu.memory_space<vmem>>, vector<8x128xf32>,
    return
  }
  func.func @transform_0(%arg0: i32, %arg1: i32) -> (i32, i32) {
    %c0_i32 = arith.constant 0 : i32
    %c0_i32_0 = arith.constant 0 : i32
    return %arg0, %c0_i32 : i32, i32
  }
  func.func @transform_1(%arg0: i32, %arg1: i32) -> (i32, i32) {
    %c0_i32 = arith.constant 0 : i32
    %c0_i32_0 = arith.constant 0 : i32
    %c0_i32_1 = arith.constant 0 : i32
    return %c0_i32, %c0_i32_0 : i32, i32
  }
  func.func @transform_2(%arg0: i32, %arg1: i32) -> (i32, i32) {
    %c0_i32 = arith.constant 0 : i32
    %c0_i32_0 = arith.constant 0 : i32
    %c0_i32_1 = arith.constant 0 : i32
    return %c0_i32, %c0_i32_0 : i32, i32
  }
  func.func @transform_3(%arg0: i32, %arg1: i32) -> (i32, i32) {
    %c0_i32 = arith.constant 0 : i32
    %c0_i32_0 = arith.constant 0 : i32
    %c0_i32_1 = arith.constant 0 : i32
    return %c0_i32, %c0_i32_0 : i32, i32
  }
  func.func @transform_4(%arg0: i32, %arg1: i32) -> (i32, i32) {
    %c0_i32 = arith.constant 0 : i32
    %c0_i32_0 = arith.constant 0 : i32
    %c0_i32_1 = arith.constant 0 : i32
    return %c0_i32, %c0_i32_0 : i32, i32
  }
  func.func @transform_5(%arg0: i32, %arg1: i32) -> (i32, i32) {
    %c0_i32 = arith.constant 0 : i32
    %c0_i32_0 = arith.constant 0 : i32
    return %c0_i32, %arg1 : i32, i32
  }
  func.func @transform_6(%arg0: i32, %arg1: i32) -> (i32, i32) {
    %c0_i32 = arith.constant 0 : i32
    %c0_i32_0 = arith.constant 0 : i32
    return %c0_i32, %arg1 : i32, i32
  }
  func.func @transform_7(%arg0: i32, %arg1: i32) -> (i32, i32) {
    %c0_i32 = arith.constant 0 : i32
    return %arg0, %arg1 : i32, i32
  }
}

</mosaic_0001>

<llo_original>
// kernel: roberta_lm_head.1
$region0: #{roberta_lm_head.1}
  #allocation0 [shape = 'u32[]', space=smem, size = 0x4, offset = 0x4, fixed_abs, tag = 'smem constant byte address 0x4 - core index']
  #allocation1 [shape = 'u32[144,128]{1,0:T(1,128)}', space=vmem, size = 0x12000, scoped, tag = 'internal scratch']
  #allocation2 [shape = 'f32[8,32]{1,0:T(8,128)}', space=vmem, size = 0x1000, scoped, tag = 'scratch operand']
  %s0 = inlined_call_operand.vmem [shape: f32[16,32], index: 0, kind: input, shape index: {}]
  %s1 = inlined_call_operand.vmem [shape: f32[32,32], index: 1, kind: input, shape index: {}]
  %s2 = inlined_call_operand.vmem [shape: f32[1,32], index: 2, kind: input, shape index: {}]
  %s3 = inlined_call_operand.vmem [shape: f32[1,32], index: 3, kind: input, shape index: {}]
  %s4 = inlined_call_operand.vmem [shape: f32[1,32], index: 4, kind: input, shape index: {}]
  %s5 = inlined_call_operand.vmem [shape: f32[32,128], index: 5, kind: input, shape index: {}]
  %s6 = inlined_call_operand.vmem [shape: f32[1,128], index: 6, kind: input, shape index: {}]
  %s7 = inlined_call_operand.vmem [shape: f32[16,128], index: 7, kind: output, shape index: {}]
  %s8 = sld [smem:[#allocation0]]
  $region65: #{roberta_lm_head.1} parent=0
    _
  %s10 = ssub.s32 1, %s8
  %s11 = scalar_select 0, %s10, %s8
  loop: start=0, step=1, limit=4
  $region2: #{roberta_lm_head.1} parent=0 // loop_pre_header
    _
  $region3: #{roberta_lm_head.1} parent=0 // loop_header
    %s13 = sphi 0, %s17
    %p14 = scmp.ge.s32.totalorder %s13, 4
    %s20 = sphi 0, %s32
    %s21 = sphi 0, %s28
    %s22 = sphi 0, %s20
    %s23 = sphi 0, %s21
    %s24 = sphi 0, %s22
    %s25 = sphi 0, %s23
    %s35 = sphi 0, %s37
    %s38 = sphi 0, %s35
    %s39 = sphi 0, %s38
    %s55 = sphi 0, %s39
    %s59 = sphi 0, %s59
    %s61 = sphi 0, %s59
    %s62 = sphi 0, %s61
    %s76 = sphi 0, %s62
    %s80 = sphi 0, %s80
    %s82 = sphi 0, %s80
    %s83 = sphi 0, %s82
    %s97 = sphi 0, %s83
    %s101 = sphi 0, %s101
    %s103 = sphi 0, %s101
    %s104 = sphi 0, %s103
    %s118 = sphi 0, %s104
    %s122 = sphi 0, %s122
    %s124 = sphi 0, %s122
    %s125 = sphi 0, %s124
    %s139 = sphi 0, %s125
    %s145 = sphi 0, %s147
    %s148 = sphi 0, %s145
    %s149 = sphi 0, %s148
    %s165 = sphi 0, %s149
    %s171 = sphi 0, %s173
    %s174 = sphi 0, %s171
    %s175 = sphi 0, %s174
    %s191 = sphi 0, %s175
    %s199 = sphi 0, %s201
    %s202 = sphi 0, %s199
    %s203 = sphi 0, %s202
    %s219 = sphi 0, %s203
  $region4: #{roberta_lm_head.1} parent=0 // loop_header_branch
    %16 = sbr.rel (%p14) target = $region8
  $region5: #{roberta_lm_head.1} parent=0 // loop_body
    %s18 = ssub.s32 %s13, 1
    %s19 = ssub.s32 %s13, 2
    %s26 = sadd.s32 1, %s21
    %p27 = scmp.ge.s32.totalorder %s26, 1
    %s28 = scalar_select %p27, 0, %s26
    %s29 = sadd.s32 1, %s20
    %s30 = scalar_select %p27, %s29, %s20
    %p31 = scmp.ge.s32.totalorder %s30, 2
    %s32 = scalar_select %p31, 0, %s30
    %s33 = ssub.s32 %s20, %s32
    %p34 = scmp.eq.s32.totalorder %s33, 0
    %s36 = sadd.s32 %s35, 1
    %s37 = scalar_select %p34, %s35, %s36
    %p40 = pneg %p34
    %p41 = scmp.eq.s32.totalorder %s13, 1
    %p42 = por %p40, %p41
    %p43 = scmp.ne.s32.totalorder %s35, %s38
    %p44 = scmp.eq.s32.totalorder %s13, 0
    %p45 = por %p43, %p44
    %p46 = scmp.ne.s32.totalorder %s35, %s38
    %p47 = scmp.eq.s32.totalorder %s18, 1
    %p48 = por %p46, %p47
    %p49 = scmp.ne.s32.totalorder %s38, %s39
    %p50 = scmp.eq.s32.totalorder %s18, 0
    %p51 = por %p49, %p50
    %p52 = scmp.ne.s32.totalorder %s38, %s39
    %p53 = scmp.eq.s32.totalorder %s19, 1
    %p54 = por %p52, %p53
    %p56 = scmp.ne.s32.totalorder %s39, %s55
    %p57 = scmp.eq.s32.totalorder %s19, 0
    %p58 = por %p56, %p57
    %s60 = sadd.s32 %s59, 1
    %p63 = scmp.eq.s32.totalorder %s13, 1
    %p64 = scmp.ne.s32.totalorder %s59, %s61
    %p65 = scmp.eq.s32.totalorder %s13, 0
    %p66 = por %p64, %p65
    %p67 = scmp.ne.s32.totalorder %s59, %s61
    %p68 = scmp.eq.s32.totalorder %s18, 1
    %p69 = por %p67, %p68
    %p70 = scmp.ne.s32.totalorder %s61, %s62
    %p71 = scmp.eq.s32.totalorder %s18, 0
    %p72 = por %p70, %p71
    %p73 = scmp.ne.s32.totalorder %s61, %s62
    %p74 = scmp.eq.s32.totalorder %s19, 1
    %p75 = por %p73, %p74
    %p77 = scmp.ne.s32.totalorder %s62, %s76
    %p78 = scmp.eq.s32.totalorder %s19, 0
    %p79 = por %p77, %p78
    %s81 = sadd.s32 %s80, 1
    %p84 = scmp.eq.s32.totalorder %s13, 1
    %p85 = scmp.ne.s32.totalorder %s80, %s82
    %p86 = scmp.eq.s32.totalorder %s13, 0
    %p87 = por %p85, %p86
    %p88 = scmp.ne.s32.totalorder %s80, %s82
    %p89 = scmp.eq.s32.totalorder %s18, 1
    %p90 = por %p88, %p89
    %p91 = scmp.ne.s32.totalorder %s82, %s83
    %p92 = scmp.eq.s32.totalorder %s18, 0
    %p93 = por %p91, %p92
    %p94 = scmp.ne.s32.totalorder %s82, %s83
    %p95 = scmp.eq.s32.totalorder %s19, 1
    %p96 = por %p94, %p95
    %p98 = scmp.ne.s32.totalorder %s83, %s97
    %p99 = scmp.eq.s32.totalorder %s19, 0
    %p100 = por %p98, %p99
    %s102 = sadd.s32 %s101, 1
    %p105 = scmp.eq.s32.totalorder %s13, 1
    %p106 = scmp.ne.s32.totalorder %s101, %s103
    %p107 = scmp.eq.s32.totalorder %s13, 0
    %p108 = por %p106, %p107
    %p109 = scmp.ne.s32.totalorder %s101, %s103
    %p110 = scmp.eq.s32.totalorder %s18, 1
    %p111 = por %p109, %p110
    %p112 = scmp.ne.s32.totalorder %s103, %s104
    %p113 = scmp.eq.s32.totalorder %s18, 0
    %p114 = por %p112, %p113
    %p115 = scmp.ne.s32.totalorder %s103, %s104
    %p116 = scmp.eq.s32.totalorder %s19, 1
    %p117 = por %p115, %p116
    %p119 = scmp.ne.s32.totalorder %s104, %s118
    %p120 = scmp.eq.s32.totalorder %s19, 0
    %p121 = por %p119, %p120
    %s123 = sadd.s32 %s122, 1
    %p126 = scmp.eq.s32.totalorder %s13, 1
    %p127 = scmp.ne.s32.totalorder %s122, %s124
    %p128 = scmp.eq.s32.totalorder %s13, 0
    %p129 = por %p127, %p128
    %p130 = scmp.ne.s32.totalorder %s122, %s124
    %p131 = scmp.eq.s32.totalorder %s18, 1
    %p132 = por %p130, %p131
    %p133 = scmp.ne.s32.totalorder %s124, %s125
    %p134 = scmp.eq.s32.totalorder %s18, 0
    %p135 = por %p133, %p134
    %p136 = scmp.ne.s32.totalorder %s124, %s125
    %p137 = scmp.eq.s32.totalorder %s19, 1
    %p138 = por %p136, %p137
    %p140 = scmp.ne.s32.totalorder %s125, %s139
    %p141 = scmp.eq.s32.totalorder %s19, 0
    %p142 = por %p140, %p141
    %s143 = ssub.s32 %s21, %s28
    %p144 = scmp.eq.s32.totalorder %s143, 0
    %s146 = sadd.s32 %s145, 1
    %s147 = scalar_select %p144, %s145, %s146
    %p150 = pneg %p144
    %p151 = scmp.eq.s32.totalorder %s13, 1
    %p152 = por %p150, %p151
    %p153 = scmp.ne.s32.totalorder %s145, %s148
    %p154 = scmp.eq.s32.totalorder %s13, 0
    %p155 = por %p153, %p154
    %p156 = scmp.ne.s32.totalorder %s145, %s148
    %p157 = scmp.eq.s32.totalorder %s18, 1
    %p158 = por %p156, %p157
    %p159 = scmp.ne.s32.totalorder %s148, %s149
    %p160 = scmp.eq.s32.totalorder %s18, 0
    %p161 = por %p159, %p160
    %p162 = scmp.ne.s32.totalorder %s148, %s149
    %p163 = scmp.eq.s32.totalorder %s19, 1
    %p164 = por %p162, %p163
    %p166 = scmp.ne.s32.totalorder %s149, %s165
    %p167 = scmp.eq.s32.totalorder %s19, 0
    %p168 = por %p166, %p167
    %s169 = ssub.s32 %s21, %s28
    %p170 = scmp.eq.s32.totalorder %s169, 0
    %s172 = sadd.s32 %s171, 1
    %s173 = scalar_select %p170, %s171, %s172
    %p176 = pneg %p170
    %p177 = scmp.eq.s32.totalorder %s13, 1
    %p178 = por %p176, %p177
    %p179 = scmp.ne.s32.totalorder %s171, %s174
    %p180 = scmp.eq.s32.totalorder %s13, 0
    %p181 = por %p179, %p180
    %p182 = scmp.ne.s32.totalorder %s171, %s174
    %p183 = scmp.eq.s32.totalorder %s18, 1
    %p184 = por %p182, %p183
    %p185 = scmp.ne.s32.totalorder %s174, %s175
    %p186 = scmp.eq.s32.totalorder %s18, 0
    %p187 = por %p185, %p186
    %p188 = scmp.ne.s32.totalorder %s174, %s175
    %p189 = scmp.eq.s32.totalorder %s19, 1
    %p190 = por %p188, %p189
    %p192 = scmp.ne.s32.totalorder %s175, %s191
    %p193 = scmp.eq.s32.totalorder %s19, 0
    %p194 = por %p192, %p193
    %s195 = ssub.s32 %s20, %s32
    %s196 = ssub.s32 %s21, %s28
    %s197 = sor.u32 %s195, %s196
    %p198 = scmp.eq.s32.totalorder %s197, 0
    %s200 = sadd.s32 %s199, 1
    %s201 = scalar_select %p198, %s199, %s200
    %p204 = pneg %p198
    %p205 = scmp.eq.s32.totalorder %s13, 1
    %p206 = por %p204, %p205
    %p207 = scmp.ne.s32.totalorder %s199, %s202
    %p208 = scmp.eq.s32.totalorder %s13, 0
    %p209 = por %p207, %p208
    %p210 = scmp.ne.s32.totalorder %s199, %s202
    %p211 = scmp.eq.s32.totalorder %s18, 1
    %p212 = por %p210, %p211
    %p213 = scmp.ne.s32.totalorder %s202, %s203
    %p214 = scmp.eq.s32.totalorder %s18, 0
    %p215 = por %p213, %p214
    %p216 = scmp.ne.s32.totalorder %s202, %s203
    %p217 = scmp.eq.s32.totalorder %s19, 1
    %p218 = por %p216, %p217
    %p220 = scmp.ne.s32.totalorder %s203, %s219
    %p221 = scmp.eq.s32.totalorder %s19, 0
    %p222 = por %p220, %p221
    %p223 = scmp.le.s32.totalorder 1, %s13
    %p224 = scmp.lt.s32.totalorder %s13, 3
    %p225 = pnand %p223, %p224
    %p226 = pneg %p225
    // Predicated region
    $region9: #{roberta_lm_head.1} parent=5 // pred_check
      _
    $region10: #{roberta_lm_head.1} parent=5 // pred_check_branch
      %228 = sbr.rel (%p225) target = $region12
    $region11: #{roberta_lm_head.1} parent=5 // pred_region
      %s229 = ssub.s32 %s13, 1
      // Predicated region
      $region13: #{roberta_lm_head.1} parent=11 // pred_check
        %p230 = pneg %p72
      $region14: #{roberta_lm_head.1} parent=11 // pred_check_branch
        %232 = sbr.rel (%p230) target = $region16
      $region15: #{roberta_lm_head.1} parent=11 // pred_region
        _
      $region16: #{roberta_lm_head.1} parent=11 // pred_fallthru
        _
      // Predicated region
      $region17: #{roberta_lm_head.1} parent=11 // pred_check
        %p233 = pneg %p93
      $region18: #{roberta_lm_head.1} parent=11 // pred_check_branch
        %235 = sbr.rel (%p233) target = $region20
      $region19: #{roberta_lm_head.1} parent=11 // pred_region
        _
      $region20: #{roberta_lm_head.1} parent=11 // pred_fallthru
        _
      // Predicated region
      $region21: #{roberta_lm_head.1} parent=11 // pred_check
        %p236 = pneg %p114
      $region22: #{roberta_lm_head.1} parent=11 // pred_check_branch
        %238 = sbr.rel (%p236) target = $region24
      $region23: #{roberta_lm_head.1} parent=11 // pred_region
        _
      $region24: #{roberta_lm_head.1} parent=11 // pred_fallthru
        _
      // Predicated region
      $region25: #{roberta_lm_head.1} parent=11 // pred_check
        %p239 = pneg %p135
      $region26: #{roberta_lm_head.1} parent=11 // pred_check_branch
        %241 = sbr.rel (%p239) target = $region28
      $region27: #{roberta_lm_head.1} parent=11 // pred_region
        _
      $region28: #{roberta_lm_head.1} parent=11 // pred_fallthru
        _
      // Predicated region
      $region29: #{roberta_lm_head.1} parent=11 // pred_check
        %p242 = pneg %p161
      $region30: #{roberta_lm_head.1} parent=11 // pred_check_branch
        %244 = sbr.rel (%p242) target = $region32
      $region31: #{roberta_lm_head.1} parent=11 // pred_region
        %p245 = scmp.lt.s32.totalorder %s23, 0
        %s246 = scalar_select %p245, %s23, 0
        %s247 = smul.addr %s246, 8
        %s248 = scalar_lea.vmem %s5, %s247
      $region32: #{roberta_lm_head.1} parent=11 // pred_fallthru
        _
      // Predicated region
      $region33: #{roberta_lm_head.1} parent=11 // pred_check
        %p249 = pneg %p187
      $region34: #{roberta_lm_head.1} parent=11 // pred_check_branch
        %251 = sbr.rel (%p249) target = $region36
      $region35: #{roberta_lm_head.1} parent=11 // pred_region
        %p252 = scmp.lt.s32.totalorder %s23, 0
        %s253 = scalar_select %p252, %s23, 0
        %s254 = scalar_lea.vmem %s6, %s253
      $region36: #{roberta_lm_head.1} parent=11 // pred_fallthru
        _
    $region12: #{roberta_lm_head.1} parent=5 // pred_fallthru
      _
    %p255 = scmp.lt.s32.totalorder %s13, 2
    // Predicated region
    $region37: #{roberta_lm_head.1} parent=5 // pred_check
      %p256 = pneg %p255
    $region38: #{roberta_lm_head.1} parent=5 // pred_check_branch
      %258 = sbr.rel (%p256) target = $region40
    $region39: #{roberta_lm_head.1} parent=5 // pred_region
      // Predicated region
      $region41: #{roberta_lm_head.1} parent=39 // pred_check
        %p259 = pneg %p45
      $region42: #{roberta_lm_head.1} parent=39 // pred_check_branch
        %261 = sbr.rel (%p259) target = $region44
      $region43: #{roberta_lm_head.1} parent=39 // pred_region
        %p262 = scmp.lt.s32.totalorder %s20, 1
        %s263 = scalar_select %p262, %s20, 1
        %s264 = smul.addr %s263, 8
        %s265 = scalar_lea.vmem %s0, %s264
      $region44: #{roberta_lm_head.1} parent=39 // pred_fallthru
        _
    $region40: #{roberta_lm_head.1} parent=5 // pred_fallthru
      _
    %p266 = scmp.le.s32.totalorder 1, %s13
    %p267 = scmp.lt.s32.totalorder %s13, 3
    %p268 = pnand %p266, %p267
    %p269 = pneg %p268
    // Predicated region
    $region45: #{roberta_lm_head.1} parent=5 // pred_check
      _
    $region46: #{roberta_lm_head.1} parent=5 // pred_check_branch
      %271 = sbr.rel (%p268) target = $region48
    $region47: #{roberta_lm_head.1} parent=5 // pred_region
      %s272 = ssub.s32 %s13, 1
      %p273 = scmp.lt.s32.totalorder %s22, 1
      %s274 = scalar_select %p273, %s22, 1
      %s275 = smul.addr %s274, 8
      %s276 = scalar_lea.vmem %s0, %s275
      %p277 = pneg %p51
      %p278 = pneg %p48
      %p279 = pneg %p72
      %p280 = pneg %p69
      %p281 = pneg %p93
      %p282 = pneg %p90
      %p283 = pneg %p114
      %p284 = pneg %p111
      %p285 = pneg %p135
      %p286 = pneg %p132
      %p287 = scmp.lt.s32.totalorder %s23, 0
      %s288 = scalar_select %p287, %s23, 0
      %s289 = smul.addr %s288, 8
      %s290 = scalar_lea.vmem %s5, %s289
      %p291 = pneg %p161
      %p292 = pneg %p158
      %p293 = scmp.lt.s32.totalorder %s23, 0
      %s294 = scalar_select %p293, %s23, 0
      %s295 = scalar_lea.vmem %s6, %s294
      %p296 = pneg %p187
      %p297 = pneg %p184
      %p298 = pneg %p215
      %p299 = pneg %p212
      %p300 = scmp.lt.s32.totalorder %s22, 1
      %s301 = scalar_select %p300, %s22, 1
      %p302 = scmp.lt.s32.totalorder %s23, 0
      %s303 = scalar_select %p302, %s23, 0
      %s304 = sadd.s32 %s303, %s301
      %s305 = smul.addr %s304, 8
      %s306 = scalar_lea.vmem %s7, %s305
      %p307 = scmp.lt.s32.totalorder %s22, 1
      %s308 = scalar_select %p307, %s22, 1
      %s309 = smul.addr %s308, 8
      %s310 = scalar_lea.vmem %s0, %s309
      %p311 = scmp.lt.s32.totalorder %s23, 0
      %s312 = scalar_select %p311, %s23, 0
      %s313 = smul.addr %s312, 8
      %s314 = scalar_lea.vmem %s5, %s313
      %p315 = scmp.lt.s32.totalorder %s23, 0
      %s316 = scalar_select %p315, %s23, 0
      %s317 = scalar_lea.vmem %s6, %s316
      %p318 = scmp.lt.s32.totalorder %s22, 1
      %s319 = scalar_select %p318, %s22, 1
      %p320 = scmp.lt.s32.totalorder %s23, 0
      %s321 = scalar_select %p320, %s23, 0
      %s322 = sadd.s32 %s321, %s319
      %s323 = smul.addr %s322, 8
      %s324 = scalar_lea.vmem %s7, %s323
      %p325 = scmp.eq.s32.totalorder %s23, 0
      // Predicated region
      $region49: #{roberta_lm_head.1} parent=47 // pred_check
        %p326 = pneg %p325
      $region50: #{roberta_lm_head.1} parent=47 // pred_check_branch
        %328 = sbr.rel (%p326) target = $region52
      $region51: #{roberta_lm_head.1} parent=47 // pred_region
        %v329 = vld [vmem:[%s310] sm:$0xff]
        %v330 = vld [vmem:[%s1] sm:$0xff]
        %v331 = vld [vmem:[%s1 + $0x8] sm:$0xff]
        %v332 = vld [vmem:[%s1 + $0x10] sm:$0xff]
        %v333 = vld [vmem:[%s1 + $0x18] sm:$0xff]
        %v334 = vld [vmem:[%s2] sm:$0x1]
        %v336 = vlaneseq
        %v337 = vshrl.u32 %v336, 7
        %v338 = vsub.s32 0, %v337
        %v339 = vrot.slane %v334, %v338
        %vm341 = vcmask 261120
        %v343 = vsel %vm341, %v329, 0
        %345 = vmatprep.subr.mxu0 0.0
        %346 = vmatpush1.msra.mxu0 0.0
        %347 = vmatprep.subr.mxu0 0.0
        %348 = vmatpush1.msra.mxu0 0.0
        %349 = vmatprep.subr.mxu0 0.0
        %350 = vmatpush1.msra.mxu0 0.0
        %351 = vmatprep.subr.mxu0 0.0
        %352 = vmatpush1.msra.mxu0 0.0
        %353 = vmatprep.subr.mxu0 0.0
        %354 = vmatpush1.msra.mxu0 0.0
        %355 = vmatprep.subr.mxu0 0.0
        %356 = vmatpush1.msra.mxu0 0.0
        %357 = vmatprep.subr.mxu0 0.0
        %358 = vmatpush1.msra.mxu0 0.0
        %359 = vmatprep.subr.mxu0 0.0
        %360 = vmatpush1.msra.mxu0 0.0
        %361 = vmatprep.subr.mxu0 0.0
        %362 = vmatpush1.msra.mxu0 0.0
        %363 = vmatprep.subr.mxu0 0.0
        %364 = vmatpush1.msra.mxu0 0.0
        %365 = vmatprep.subr.mxu0 0.0
        %366 = vmatpush1.msra.mxu0 0.0
        %367 = vmatprep.subr.mxu0 0.0
        %368 = vmatpush1.msra.mxu0 0.0
        %369 = vmatprep.subr.mxu0 0.0
        %370 = vmatpush1.msra.mxu0 %v333
        %371 = vmatprep.subr.mxu0 0.0
        %372 = vmatpush1.msra.mxu0 %v332
        %373 = vmatprep.subr.mxu0 0.0
        %374 = vmatpush1.msra.mxu0 %v331
        %375 = vmatprep.subr.mxu0 0.0
        %376 = vmatpush1.msra.mxu0 %v330
        %377 = vmatprep.subr.mxu0 0.0
        %378 = vmatpush2.msra.mxu0 0.0
        %379 = vmatprep.subr.mxu0 0.0
        %380 = vmatpush2.msra.mxu0 0.0
        %381 = vmatprep.subr.mxu0 0.0
        %382 = vmatpush2.msra.mxu0 0.0
        %383 = vmatprep.subr.mxu0 0.0
        %384 = vmatpush2.msra.mxu0 0.0
        %385 = vmatprep.subr.mxu0 0.0
        %386 = vmatpush2.msra.mxu0 0.0
        %387 = vmatprep.subr.mxu0 0.0
        %388 = vmatpush2.msra.mxu0 0.0
        %389 = vmatprep.subr.mxu0 0.0
        %390 = vmatpush2.msra.mxu0 0.0
        %391 = vmatprep.subr.mxu0 0.0
        %392 = vmatpush2.msra.mxu0 0.0
        %393 = vmatprep.subr.mxu0 0.0
        %394 = vmatpush2.msra.mxu0 0.0
        %395 = vmatprep.subr.mxu0 0.0
        %396 = vmatpush2.msra.mxu0 0.0
        %397 = vmatprep.subr.mxu0 0.0
        %398 = vmatpush2.msra.mxu0 0.0
        %399 = vmatprep.subr.mxu0 0.0
        %400 = vmatpush2.msra.mxu0 0.0
        %401 = vmatprep.subr.mxu0 0.0
        %402 = vmatpush2.msra.mxu0 0.0
        %403 = vmatprep.subr.mxu0 0.0
        %404 = vmatpush2.msra.mxu0 0.0
        %405 = vmatprep.subr.mxu0 0.0
        %406 = vmatpush2.msra.mxu0 0.0
        %407 = vmatprep.subr.mxu0 0.0
        %408 = vmatpush2.msra.mxu0 0.0
        %409 = vmatprep.mubr.f32.mxu0 0.0
        %410 = vmatmul.mubr.f32.gmra.mxu0 %v343
        %v411 = vpop.f32.mrf.mxu0
        %v412 = vadd.f32 %v339, %v411
        %v413 = vpop.f32.mrf.mxu0
        %414 = vdwg.mxu0
        %v415 = vmul.f32 %v412, 0.5
        %v416 = vmul.f32 %v412, 0.70710677
        %v417 = verf.f32.pop %v416
        %v418 = vadd.f32 %v417, 1.0
        %v419 = vmul.f32 %v415, %v418
        %v420 = vsel %vm341, %v419, 0.0
        %421 = vadd.xlane.f32.xlu0 %v420
        %v422 = vpop.xlane.xlu0 %421
        %v423 = vrcp.pop 32.0
        %v424 = vmul.f32 %v422, %v423
        %v425 = vsub.f32 %v419, %v424
        %v426 = vmul.f32 %v425, %v425
        %v427 = vsel %vm341, %v426, 0.0
        %428 = vadd.xlane.f32.xlu0 %v427
        %v429 = vpop.xlane.xlu0 %428
        %v430 = vmul.f32 %v429, %v423
        %v431 = vadd.f32 %v430, 1e-05
        %v432 = vrsqrt.pop %v431
        %v433 = vmul.f32 %v425, %v432
        %v434 = vld [vmem:[%s3] sm:$0x1]
        %v436 = vlaneseq
        %v437 = vshrl.u32 %v436, 7
        %v438 = vsub.s32 0, %v437
        %v439 = vrot.slane %v434, %v438
        %v441 = vmul.f32 %v433, %v439
        %v442 = vld [vmem:[%s4] sm:$0x1]
        %v444 = vlaneseq
        %v445 = vshrl.u32 %v444, 7
        %v446 = vsub.s32 0, %v445
        %v447 = vrot.slane %v442, %v446
        %v449 = vadd.f32 %v441, %v447
        %450 = vst.msk [vmem:[#allocation2] sm:$0xff] %vm341, %v449
      $region52: #{roberta_lm_head.1} parent=47 // pred_fallthru
        _
      %v451 = vld [vmem:[#allocation2] sm:$0xff]
      %v452 = vld [vmem:[%s314] sm:$0xff]
      %v453 = vld [vmem:[%s314 + $0x8] sm:$0xff]
      %v454 = vld [vmem:[%s314 + $0x10] sm:$0xff]
      %v455 = vld [vmem:[%s314 + $0x18] sm:$0xff]
      %v456 = vld [vmem:[%s317] sm:$0x1]
      %v458 = vlaneseq
      %v459 = vshrl.u32 %v458, 7
      %v460 = vsub.s32 0, %v459
      %v461 = vrot.slane %v456, %v460
      %vm463 = vcmask 261120
      %v465 = vsel %vm463, %v451, 0
      %467 = vmatprep.subr.mxu0 0.0
      %468 = vmatpush1.msra.mxu0 0.0
      %469 = vmatprep.subr.mxu0 0.0
      %470 = vmatpush1.msra.mxu0 0.0
      %471 = vmatprep.subr.mxu0 0.0
      %472 = vmatpush1.msra.mxu0 0.0
      %473 = vmatprep.subr.mxu0 0.0
      %474 = vmatpush1.msra.mxu0 0.0
      %475 = vmatprep.subr.mxu0 0.0
      %476 = vmatpush1.msra.mxu0 0.0
      %477 = vmatprep.subr.mxu0 0.0
      %478 = vmatpush1.msra.mxu0 0.0
      %479 = vmatprep.subr.mxu0 0.0
      %480 = vmatpush1.msra.mxu0 0.0
      %481 = vmatprep.subr.mxu0 0.0
      %482 = vmatpush1.msra.mxu0 0.0
      %483 = vmatprep.subr.mxu0 0.0
      %484 = vmatpush1.msra.mxu0 0.0
      %485 = vmatprep.subr.mxu0 0.0
      %486 = vmatpush1.msra.mxu0 0.0
      %487 = vmatprep.subr.mxu0 0.0
      %488 = vmatpush1.msra.mxu0 0.0
      %489 = vmatprep.subr.mxu0 0.0
      %490 = vmatpush1.msra.mxu0 0.0
      %491 = vmatprep.subr.mxu0 0.0
      %492 = vmatpush1.msra.mxu0 %v455
      %493 = vmatprep.subr.mxu0 0.0
      %494 = vmatpush1.msra.mxu0 %v454
      %495 = vmatprep.subr.mxu0 0.0
      %496 = vmatpush1.msra.mxu0 %v453
      %497 = vmatprep.subr.mxu0 0.0
      %498 = vmatpush1.msra.mxu0 %v452
      %499 = vmatprep.subr.mxu0 0.0
      %500 = vmatpush2.msra.mxu0 0.0
      %501 = vmatprep.subr.mxu0 0.0
      %502 = vmatpush2.msra.mxu0 0.0
      %503 = vmatprep.subr.mxu0 0.0
      %504 = vmatpush2.msra.mxu0 0.0
      %505 = vmatprep.subr.mxu0 0.0
      %506 = vmatpush2.msra.mxu0 0.0
      %507 = vmatprep.subr.mxu0 0.0
      %508 = vmatpush2.msra.mxu0 0.0
      %509 = vmatprep.subr.mxu0 0.0
      %510 = vmatpush2.msra.mxu0 0.0
      %511 = vmatprep.subr.mxu0 0.0
      %512 = vmatpush2.msra.mxu0 0.0
      %513 = vmatprep.subr.mxu0 0.0
      %514 = vmatpush2.msra.mxu0 0.0
      %515 = vmatprep.subr.mxu0 0.0
      %516 = vmatpush2.msra.mxu0 0.0
      %517 = vmatprep.subr.mxu0 0.0
      %518 = vmatpush2.msra.mxu0 0.0
      %519 = vmatprep.subr.mxu0 0.0
      %520 = vmatpush2.msra.mxu0 0.0
      %521 = vmatprep.subr.mxu0 0.0
      %522 = vmatpush2.msra.mxu0 0.0
      %523 = vmatprep.subr.mxu0 0.0
      %524 = vmatpush2.msra.mxu0 0.0
      %525 = vmatprep.subr.mxu0 0.0
      %526 = vmatpush2.msra.mxu0 0.0
      %527 = vmatprep.subr.mxu0 0.0
      %528 = vmatpush2.msra.mxu0 0.0
      %529 = vmatprep.subr.mxu0 0.0
      %530 = vmatpush2.msra.mxu0 0.0
      %531 = vmatprep.mubr.f32.mxu0 0.0
      %532 = vmatmul.mubr.f32.gmra.mxu0 %v465
      %v533 = vpop.f32.mrf.mxu0
      %v534 = vadd.f32 %v461, %v533
      %v535 = vpop.f32.mrf.mxu0
      %536 = vdwg.mxu0
      %537 = vst [vmem:[%s324] sm:$0xff] %v534
      %p538 = scmp.lt.s32.totalorder %s22, 1
      %s539 = scalar_select %p538, %s22, 1
      %p540 = scmp.lt.s32.totalorder %s23, 0
      %s541 = scalar_select %p540, %s23, 0
      %s542 = sadd.s32 %s541, %s539
      %s543 = smul.addr %s542, 8
      %s544 = scalar_lea.vmem %s7, %s543
      // Predicated region
      $region53: #{roberta_lm_head.1} parent=47 // pred_check
        %p545 = pneg %p212
      $region54: #{roberta_lm_head.1} parent=47 // pred_check_branch
        %547 = sbr.rel (%p545) target = $region56
      $region55: #{roberta_lm_head.1} parent=47 // pred_region
        _
      $region56: #{roberta_lm_head.1} parent=47 // pred_fallthru
        _
    $region48: #{roberta_lm_head.1} parent=5 // pred_fallthru
      _
    %p548 = scmp.le.s32.totalorder 2, %s13
    // Predicated region
    $region57: #{roberta_lm_head.1} parent=5 // pred_check
      %p549 = pneg %p548
    $region58: #{roberta_lm_head.1} parent=5 // pred_check_branch
      %551 = sbr.rel (%p549) target = $region60
    $region59: #{roberta_lm_head.1} parent=5 // pred_region
      %s552 = ssub.s32 %s13, 2
      // Predicated region
      $region61: #{roberta_lm_head.1} parent=59 // pred_check
        %p553 = pneg %p218
      $region62: #{roberta_lm_head.1} parent=59 // pred_check_branch
        %555 = sbr.rel (%p553) target = $region64
      $region63: #{roberta_lm_head.1} parent=59 // pred_region
        %p556 = scmp.lt.s32.totalorder %s24, 1
        %s557 = scalar_select %p556, %s24, 1
        %p558 = scmp.lt.s32.totalorder %s25, 0
        %s559 = scalar_select %p558, %s25, 0
        %s560 = sadd.s32 %s559, %s557
        %s561 = smul.addr %s560, 8
        %s562 = scalar_lea.vmem %s7, %s561
      $region64: #{roberta_lm_head.1} parent=59 // pred_fallthru
        _
    $region60: #{roberta_lm_head.1} parent=5 // pred_fallthru
      _
  $region6: #{roberta_lm_head.1} parent=0 // loop_footer
    %s17 = sadd.s32 1, %s13
  $region7: #{roberta_lm_head.1} parent=0 // loop_footer_branch
    %12 = sbr.rel target = $region3
  $region8: #{roberta_lm_head.1} parent=0 // loop_exit
    _

</llo_original>
